<compile_context>
chip_gen: v6e
topology: v6e:2x2x1
jax: 0.10.0
libtpu: 0.0.40
codegen_flags: <defaults>
</compile_context>

<pallas_src>
import functools

import jax
import jax.numpy as jnp
from jax.experimental import pallas as pl
from jax.experimental.pallas import tpu as pltpu


# ----------------------------------------------------------------------------
# Fused kernel: stats accumulation + copy, then broadcast-channel writeback.
# ----------------------------------------------------------------------------
def _fused_kernel(x_ref, out_ref, acc_ref, *, R, inv_chw):
    # x_ref / out_ref : (G, Bt, T) lane-dense tiles
    # acc_ref         : (Bt, 1) f32 running sum of the per-element group stddev
    r = pl.program_id(2)

    @pl.when(r < R)                       # ---- reduction + fused-copy phase ----
    def _():
        xt = x_ref[...]                                # (G, Bt, T)
        xf = xt.astype(jnp.float32)
        mu = jnp.mean(xf, axis=0, keepdims=True)       # mean over the group dim (VPU)
        var = jnp.mean(jnp.square(xf - mu), axis=0)    # (Bt, T)
        std = jnp.sqrt(var + 1e-8)

        @pl.when(r == 0)
        def _():
            acc_ref[...] = jnp.zeros_like(acc_ref)

        # single lane-axis reduction per tile, accumulated across the r axis
        acc_ref[...] += jnp.sum(std, axis=-1, keepdims=True)
        # fused copy of x into the first C channels of the output
        out_ref[...] = xt

    @pl.when(r >= R)                      # ---- broadcast-channel writeback ----
    def _():
        stat = acc_ref[...] * inv_chw                  # (Bt, 1) minibatch stddev
        g, bt, t = out_ref.shape
        out_ref[...] = jnp.broadcast_to(
            stat.reshape(1, bt, 1), (g, bt, t)).astype(out_ref.dtype)


# ----------------------------------------------------------------------------
# Small-spatial fallback (H*W not a multiple of 128): whole tensor in one block.
# ----------------------------------------------------------------------------
def _small_kernel(x_ref, out_ref, *, Fc, c, HW):
    G, B, CHW = x_ref.shape
    xt = x_ref[...]
    xf = xt.astype(jnp.float32)
    mu = jnp.mean(xf, axis=0, keepdims=True)
    std = jnp.sqrt(jnp.mean(jnp.square(xf - mu), axis=0) + 1e-8)     # (B, C*HW)
    out_ref[:, :, :CHW] = xt
    for f in range(Fc):                                              # Fc is tiny (usually 1)
        stat = jnp.mean(std[:, f * c * HW:(f + 1) * c * HW], axis=-1, keepdims=True)
        out_ref[:, :, CHW + f * HW: CHW + (f + 1) * HW] = jnp.broadcast_to(
            stat[None], (G, B, HW)).astype(out_ref.dtype)


def _minibatch_std_small(x, G, B, Fc, c, HW):
    # TODO(synk): this whole-array path assumes the low-resolution tensor fits in VMEM,
    # which is always true where MinibatchStdLayer is used (4x4 / 8x8 feature maps).
    N, C, H, W = x.shape
    x3 = x.reshape(G, B, C * HW)
    out3 = pl.pallas_call(
        functools.partial(_small_kernel, Fc=Fc, c=c, HW=HW),
        out_shape=jax.ShapeDtypeStruct((G, B, (C + Fc) * HW), x.dtype),
        compiler_params=pltpu.CompilerParams(
            # explicit scoped-VMEM request so behaviour is deterministic across
            # v5e (16 MiB default) / v6e / v7x for this single-block variant
            vmem_limit_bytes=int(min(100 * 2**20,
                                     max(32 * 2**20,
                                         4 * x3.size * x3.dtype.itemsize)))),
    )(x3)
    return out3.reshape(N, C + Fc, H, W)


# ----------------------------------------------------------------------------
# Wrapper
# ----------------------------------------------------------------------------
def _pick_tile(hw, g, bt, itemsize):
    """Largest multiple-of-128 divisor of H*W whose (G, Bt, T) tile stays <= ~2 MiB."""
    cap = max(128, (2 * 1024 * 1024) // (g * bt * max(itemsize, 4)))
    t = hw
    while t > cap and t % 2 == 0 and (t // 2) % 128 == 0:
        t //= 2
    return t


def minibatch_std_layer(x, group_size=2, num_channels=1):
    N, C, H, W = x.shape
    G = N if group_size is None else min(group_size, N)
    Fc = num_channels
    assert N % G == 0 and C % Fc == 0, "same divisibility assumptions as the PyTorch layer"
    B = N // G
    c = C // Fc
    HW = H * W
    cHW = c * HW

    if HW % 128 != 0:
        return _minibatch_std_small(x, G, B, Fc, c, HW)

    # Split B when possible so v7x's two TensorCores each get a parallel shard.
    Bt = 8 if (B > 8 and B % 8 == 0) else B
    T = _pick_tile(HW, G, Bt, x.dtype.itemsize)
    R = cHW // T            # reduction / fused-copy steps per (b-block, f)
    Rb = HW // T            # broadcast writeback steps per (b-block, f)

    x3 = x.reshape(G, B, C * HW)                       # metadata-only, lane-dense

    def x_index(bi, f, r):
        # tail (broadcast) steps re-point harmlessly at the last copy tile
        return (0, bi, f * R + jnp.minimum(r, R - 1))

    def out_index(bi, f, r):
        copy_blk = f * R + r
        bcast_blk = Fc * R + f * Rb + (r - R)
        return (0, bi, jnp.where(r < R, copy_blk, bcast_blk))

    out3 = pl.pallas_call(
        functools.partial(_fused_kernel, R=R, inv_chw=1.0 / cHW),
        grid=(B // Bt, Fc, R + Rb),
        in_specs=[pl.BlockSpec((G, Bt, T), x_index)],
        out_specs=pl.BlockSpec((G, Bt, T), out_index),
        out_shape=jax.ShapeDtypeStruct((G, B, (C + Fc) * HW), x.dtype),
        scratch_shapes=[pltpu.VMEM((Bt, 1), jnp.float32)],
        compiler_params=pltpu.CompilerParams(
            dimension_semantics=("parallel", "parallel", "arbitrary")),
    )(x3)
    return out3.reshape(N, C + Fc, H, W)


# ----------------------------------------------------------------------------
# Pure-JAX reference mirroring the PyTorch forward exactly.
# ----------------------------------------------------------------------------
def minibatch_std_ref(x, group_size, num_channels):
    N, C, H, W = x.shape
    G = N if group_size is None else min(group_size, N)
    Fc = num_channels
    c = C // Fc
    y = x.reshape(G, -1, Fc, c, H, W)
    y = y - jnp.mean(y, axis=0)
    y = jnp.mean(jnp.square(y), axis=0)
    y = jnp.sqrt(y + 1e-8)
    y = jnp.mean(y, axis=(2, 3, 4))
    y = y.reshape(-1, Fc, 1, 1)
    y = jnp.tile(y, (G, 1, H, W))
    return jnp.concatenate([x, y], axis=1)


if __name__ == "__main__":
    key = jax.random.PRNGKey(0)

    def _check(shape, group_size, num_channels, k):
        x = jax.random.normal(k, shape, dtype=jnp.float32)
        out = jax.block_until_ready(
            minibatch_std_layer(x, group_size=group_size, num_channels=num_channels))
        ref = minibatch_std_ref(x, group_size, num_channels)
        assert out.shape == ref.shape, (out.shape, ref.shape)
        assert out.dtype == x.dtype
        err = float(jnp.max(jnp.abs(out - ref)))
        assert jnp.allclose(out, ref, atol=1e-5, rtol=1e-5), err

    k0, k1, k2 = jax.random.split(key, 3)
    _check((4, 4, 16, 16), 2, 2, k0)   # fused tiled path, F=2 (primary example)
    _check((4, 6, 16, 16), 2, 1, k1)   # fused tiled path, F=1 (module default)
    _check((4, 8, 4, 4), 2, 2, k2)     # small-spatial full-block fallback path
    print("KERNEL_OK")
</pallas_src>

<mosaic_0001>
module attributes {stable_mosaic.version = 11 : i64} {
  func.func @_fused_kernel(%arg0: i32, %arg1: i32, %arg2: i32, %arg3: memref<2x2x256xf32, #tpu.memory_space<vmem>>, %arg4: memref<2x2x256xf32, #tpu.memory_space<vmem>>, %arg5: memref<2x1xf32, #tpu.memory_space<vmem>>) attributes {dimension_semantics = [#tpu.dimension_semantics<parallel>, #tpu.dimension_semantics<parallel>, #tpu.dimension_semantics<arbitrary>], iteration_bounds = array<i64: 1, 2, 3>, scalar_prefetch = 0 : i64, scratch_operands = 1 : i64, tpu.core_type = #tpu.core_type<tc>, window_params = [{transform_indices = @transform_0, window_bounds = array<i64: 2, 2, 256>}, {transform_indices = @transform_1, window_bounds = array<i64: 2, 2, 256>}]} {
    %c2_i32 = arith.constant 2 : i32
    %0 = arith.cmpi slt, %arg2, %c2_i32 : i32
    %1 = arith.extui %0 : i1 to i32
    %c0_i32 = arith.constant 0 : i32
    %2 = arith.cmpi ne, %1, %c0_i32 : i32
    scf.if %2 {
      %c0 = arith.constant 0 : index
      %c0_2 = arith.constant 0 : index
      %c0_3 = arith.constant 0 : index
      %6 = vector.load %arg3[%c0, %c0_2, %c0_3] : memref<2x2x256xf32, #tpu.memory_space<vmem>>, vector<2x2x256xf32>
      %cst = arith.constant dense<0.000000e+00> : vector<2x256xf32>
      %7 = vector.multi_reduction <add>, %6, %cst [0] : vector<2x2x256xf32> to vector<2x256xf32>
      %8 = vector.shape_cast %7 : vector<2x256xf32> to vector<1x2x256xf32>
      %cst_4 = arith.constant 2.000000e+00 : f32
      %9 = vector.broadcast %cst_4 : f32 to vector<1x2x256xf32>
      %10 = arith.divf %8, %9 : vector<1x2x256xf32>
      %11 = vector.broadcast %10 : vector<1x2x256xf32> to vector<2x2x256xf32>
      %12 = arith.subf %6, %11 : vector<2x2x256xf32>
      %13 = arith.mulf %12, %12 : vector<2x2x256xf32>
      %cst_5 = arith.constant dense<0.000000e+00> : vector<2x256xf32>
      %14 = vector.multi_reduction <add>, %13, %cst_5 [0] : vector<2x2x256xf32> to vector<2x256xf32>
      %cst_6 = arith.constant 2.000000e+00 : f32
      %15 = vector.broadcast %cst_6 : f32 to vector<2x256xf32>
      %16 = arith.divf %14, %15 : vector<2x256xf32>
      %cst_7 = arith.constant 9.99999993E-9 : f32
      %17 = vector.broadcast %cst_7 : f32 to vector<2x256xf32>
      %18 = arith.addf %16, %17 : vector<2x256xf32>
      %19 = math.sqrt %18 : vector<2x256xf32>
      %c0_i32_8 = arith.constant 0 : i32
      %20 = arith.cmpi eq, %arg2, %c0_i32_8 : i32
      %21 = arith.extui %20 : i1 to i32
      %c0_i32_9 = arith.constant 0 : i32
      %22 = arith.cmpi ne, %21, %c0_i32_9 : i32
      scf.if %22 {
        %cst_18 = arith.constant 0.000000e+00 : f32
        %29 = vector.broadcast %cst_18 : f32 to vector<2x1xf32>
        %c0_19 = arith.constant 0 : index
        %c0_20 = arith.constant 0 : index
        %30 = vector.load %arg5[%c0_19, %c0_20] : memref<2x1xf32, #tpu.memory_space<vmem>>, vector<2x1xf32>
        tpu.vector_store %arg5[%c0_19, %c0_20], %29 {strides = array<i32>} : memref<2x1xf32, #tpu.memory_space<vmem>>, vector<2x1xf32>,
      } else {
      }
      %c0_10 = arith.constant 0 : index
      %c0_11 = arith.constant 0 : index
      %23 = vector.load %arg5[%c0_10, %c0_11] : memref<2x1xf32, #tpu.memory_space<vmem>>, vector<2x1xf32>
      %cst_12 = arith.constant dense<0.000000e+00> : vector<2xf32>
      %24 = vector.multi_reduction <add>, %19, %cst_12 [1] : vector<2x256xf32> to vector<2xf32>
      %25 = vector.shape_cast %24 : vector<2xf32> to vector<2x1xf32>
      %26 = arith.addf %23, %25 : vector<2x1xf32>
      %c0_13 = arith.constant 0 : index
      %c0_14 = arith.constant 0 : index
      %27 = vector.load %arg5[%c0_13, %c0_14] : memref<2x1xf32, #tpu.memory_space<vmem>>, vector<2x1xf32>
      tpu.vector_store %arg5[%c0_13, %c0_14], %26 {strides = array<i32>} : memref<2x1xf32, #tpu.memory_space<vmem>>, vector<2x1xf32>,
      %c0_15 = arith.constant 0 : index
      %c0_16 = arith.constant 0 : index
      %c0_17 = arith.constant 0 : index
      %28 = vector.load %arg4[%c0_15, %c0_16, %c0_17] : memref<2x2x256xf32, #tpu.memory_space<vmem>>, vector<2x2x256xf32>
      tpu.vector_store %arg4[%c0_15, %c0_16, %c0_17], %6 {strides = array<i32>} : memref<2x2x256xf32, #tpu.memory_space<vmem>>, vector<2x2x256xf32>,
    } else {
    }
    %c2_i32_0 = arith.constant 2 : i32
    %3 = arith.cmpi sge, %arg2, %c2_i32_0 : i32
    %4 = arith.extui %3 : i1 to i32
    %c0_i32_1 = arith.constant 0 : i32
    %5 = arith.cmpi ne, %4, %c0_i32_1 : i32
    scf.if %5 {
      %c0 = arith.constant 0 : index
      %c0_2 = arith.constant 0 : index
      %6 = vector.load %arg5[%c0, %c0_2] : memref<2x1xf32, #tpu.memory_space<vmem>>, vector<2x1xf32>
      %cst = arith.constant 0.001953125 : f32
      %7 = vector.broadcast %cst : f32 to vector<2x1xf32>
      %8 = arith.mulf %6, %7 : vector<2x1xf32>
      %9 = vector.shape_cast %8 : vector<2x1xf32> to vector<1x2x1xf32>
      %10 = vector.shape_cast %9 : vector<1x2x1xf32> to vector<1x2x1xf32>
      %11 = vector.broadcast %10 : vector<1x2x1xf32> to vector<2x2x256xf32>
      %c0_3 = arith.constant 0 : index
      %c0_4 = arith.constant 0 : index
      %c0_5 = arith.constant 0 : index
      %12 = vector.load %arg4[%c0_3, %c0_4, %c0_5] : memref<2x2x256xf32, #tpu.memory_space<vmem>>, vector<2x2x256xf32>
      tpu.vector_store %arg4[%c0_3, %c0_4, %c0_5], %11 {strides = array<i32>} : memref<2x2x256xf32, #tpu.memory_space<vmem>>, vector<2x2x256xf32>,
    } else {
    }
    return
  }
  func.func @transform_0(%arg0: i32, %arg1: i32, %arg2: i32) -> (i32, i32, i32) {
    %c2_i32 = arith.constant 2 : i32
    %0 = arith.muli %arg1, %c2_i32 : i32
    %c1_i32 = arith.constant 1 : i32
    %1 = arith.minsi %arg2, %c1_i32 : i32
    %2 = arith.addi %0, %1 : i32
    %c0_i32 = arith.constant 0 : i32
    %c0_i32_0 = arith.constant 0 : i32
    return %c0_i32, %arg0, %2 : i32, i32, i32
  }
  func.func @transform_1(%arg0: i32, %arg1: i32, %arg2: i32) -> (i32, i32, i32) {
    %c2_i32 = arith.constant 2 : i32
    %0 = arith.muli %arg1, %c2_i32 : i32
    %1 = arith.addi %0, %arg2 : i32
    %c1_i32 = arith.constant 1 : i32
    %2 = arith.muli %arg1, %c1_i32 : i32
    %c4_i32 = arith.constant 4 : i32
    %3 = arith.addi %c4_i32, %2 : i32
    %c2_i32_0 = arith.constant 2 : i32
    %4 = arith.subi %arg2, %c2_i32_0 : i32
    %5 = arith.addi %3, %4 : i32
    %c2_i32_1 = arith.constant 2 : i32
    %6 = arith.cmpi slt, %arg2, %c2_i32_1 : i32
    %7 = arith.select %6, %1, %5 : i32
    %c0_i32 = arith.constant 0 : i32
    %c0_i32_2 = arith.constant 0 : i32
    return %c0_i32, %arg0, %7 : i32, i32, i32
  }
}

</mosaic_0001>

<llo_original>
// kernel: tpu_custom_call.1
$region0: #{tpu_custom_call.1}
  #allocation0 [shape = 'u32[]', space=smem, size = 0x4, offset = 0x4, fixed_abs, tag = 'smem constant byte address 0x4 - core index']
  #allocation1 [shape = 'u32[144,128]{1,0:T(1,128)}', space=vmem, size = 0x12000, scoped, tag = 'internal scratch']
  #allocation2 [shape = 'f32[2,1]{1,0:T(2,128)}', space=vmem, size = 0x400, scoped, tag = 'scratch operand']
  %s0 = inlined_call_operand.hbm [shape: f32[2,2,1024], index: 0, kind: input, shape index: {}]
  %s1 = inlined_call_operand.hbm [shape: f32[2,2,1536], index: 1, kind: output, shape index: {}]
  %s2 = sld [smem:[#allocation0]]
  $region53: #{tpu_custom_call.1} parent=0
    _
  %s4 = ssub.s32 1, %s2
  %s5 = scalar_select 0, %s4, %s2
  $region1: #{tpu_custom_call.1} parent=0
    #allocation3 [shape = 'u8[8192]{0}', space=vmem, size = 0x2000, scoped, tag = 'input window, operand 0']
    #allocation4 [shape = 's32[2]{0}', space=sflag, size = 0x8, scoped, tag = 'scoped memory for tpu_custom_call.1']
    #allocation5 [shape = 's32[2]{0}', space=sflag, size = 0x8, scoped, tag = 'scoped memory for tpu_custom_call.1']
    #allocation6 [shape = 'u8[8192]{0}', space=vmem, size = 0x2000, scoped, tag = 'output window, operand 0']
    %6 = vsyncpa [#allocation4], 0
    %s7 = scalar_lea.sflag [#allocation4], 1
    %8 = vsyncpa %s7, 0
    %9 = vsyncpa [#allocation5], 0
    %s10 = scalar_lea.sflag [#allocation5], 1
    %11 = vsyncpa %s10, 0
    loop: start=0, step=1, limit=8
    $region2: #{tpu_custom_call.1} parent=1 // loop_pre_header
      _
    $region3: #{tpu_custom_call.1} parent=1 // loop_header
      %s13 = sphi 0, %s17
      %p14 = scmp.ge.s32.totalorder %s13, 8
      %s20 = sphi 0, %s39
      %s21 = sphi 0, %s35
      %s22 = sphi 0, %s31
      %s23 = sphi 0, %s20
      %s24 = sphi 0, %s21
      %s25 = sphi 0, %s22
      %s26 = sphi 0, %s23
      %s27 = sphi 0, %s24
      %s28 = sphi 0, %s25
      %s52 = sphi 0, %s54
      %s55 = sphi 0, %s52
      %s56 = sphi 0, %s55
      %s72 = sphi 0, %s56
      %s94 = sphi 0, %s96
      %s97 = sphi 0, %s94
      %s98 = sphi 0, %s97
      %s114 = sphi 0, %s98
    $region4: #{tpu_custom_call.1} parent=1 // loop_header_branch
      %16 = sbr.rel (%p14) target = $region8
    $region5: #{tpu_custom_call.1} parent=1 // loop_body
      %s18 = ssub.s32 %s13, 1
      %s19 = ssub.s32 %s13, 2
      %s29 = sadd.s32 1, %s22
      %p30 = scmp.ge.s32.totalorder %s29, 3
      %s31 = scalar_select %p30, 0, %s29
      %s32 = sadd.s32 1, %s21
      %s33 = scalar_select %p30, %s32, %s21
      %p34 = scmp.ge.s32.totalorder %s33, 2
      %s35 = scalar_select %p34, 0, %s33
      %s36 = sadd.s32 1, %s20
      %s37 = scalar_select %p34, %s36, %s20
      %p38 = scmp.ge.s32.totalorder %s37, 1
      %s39 = scalar_select %p38, 0, %s37
      %s40 = smul.u32 %s21, 2
      %p41 = scmp.lt.s32.totalorder %s22, 1
      %s42 = scalar_select %p41, %s22, 1
      %s43 = sadd.s32 %s40, %s42
      %s44 = smul.u32 %s35, 2
      %p45 = scmp.lt.s32.totalorder %s31, 1
      %s46 = scalar_select %p45, %s31, 1
      %s47 = sadd.s32 %s44, %s46
      %s48 = ssub.s32 %s20, %s39
      %s49 = ssub.s32 %s43, %s47
      %s50 = sor.u32 %s48, %s49
      %p51 = scmp.eq.s32.totalorder %s50, 0
      %s53 = sadd.s32 %s52, 1
      %s54 = scalar_select %p51, %s52, %s53
      %p57 = pneg %p51
      %p58 = scmp.eq.s32.totalorder %s13, 5
      %p59 = por %p57, %p58
      %p60 = scmp.ne.s32.totalorder %s52, %s55
      %p61 = scmp.eq.s32.totalorder %s13, 0
      %p62 = por %p60, %p61
      %p63 = scmp.ne.s32.totalorder %s52, %s55
      %p64 = scmp.eq.s32.totalorder %s18, 5
      %p65 = por %p63, %p64
      %p66 = scmp.ne.s32.totalorder %s55, %s56
      %p67 = scmp.eq.s32.totalorder %s18, 0
      %p68 = por %p66, %p67
      %p69 = scmp.ne.s32.totalorder %s55, %s56
      %p70 = scmp.eq.s32.totalorder %s19, 5
      %p71 = por %p69, %p70
      %p73 = scmp.ne.s32.totalorder %s56, %s72
      %p74 = scmp.eq.s32.totalorder %s19, 0
      %p75 = por %p73, %p74
      %s76 = smul.u32 %s21, 2
      %s77 = sadd.s32 %s76, %s22
      %s78 = sadd.s32 %s21, 4
      %s79 = ssub.s32 %s22, 2
      %s80 = sadd.s32 %s78, %s79
      %p81 = scmp.lt.s32.totalorder %s22, 2
      %s82 = scalar_select %p81, %s77, %s80
      %s83 = smul.u32 %s35, 2
      %s84 = sadd.s32 %s83, %s31
      %s85 = sadd.s32 %s35, 4
      %s86 = ssub.s32 %s31, 2
      %s87 = sadd.s32 %s85, %s86
      %p88 = scmp.lt.s32.totalorder %s31, 2
      %s89 = scalar_select %p88, %s84, %s87
      %s90 = ssub.s32 %s20, %s39
      %s91 = ssub.s32 %s82, %s89
      %s92 = sor.u32 %s90, %s91
      %p93 = scmp.eq.s32.totalorder %s92, 0
      %s95 = sadd.s32 %s94, 1
      %s96 = scalar_select %p93, %s94, %s95
      %p99 = pneg %p93
      %p100 = scmp.eq.s32.totalorder %s13, 5
      %p101 = por %p99, %p100
      %p102 = scmp.ne.s32.totalorder %s94, %s97
      %p103 = scmp.eq.s32.totalorder %s13, 0
      %p104 = por %p102, %p103
      %p105 = scmp.ne.s32.totalorder %s94, %s97
      %p106 = scmp.eq.s32.totalorder %s18, 5
      %p107 = por %p105, %p106
      %p108 = scmp.ne.s32.totalorder %s97, %s98
      %p109 = scmp.eq.s32.totalorder %s18, 0
      %p110 = por %p108, %p109
      %p111 = scmp.ne.s32.totalorder %s97, %s98
      %p112 = scmp.eq.s32.totalorder %s19, 5
      %p113 = por %p111, %p112
      %p115 = scmp.ne.s32.totalorder %s98, %s114
      %p116 = scmp.eq.s32.totalorder %s19, 0
      %p117 = por %p115, %p116
      %p118 = scmp.le.s32.totalorder 1, %s13
      %p119 = scmp.lt.s32.totalorder %s13, 7
      %p120 = pnand %p118, %p119
      %p121 = pneg %p120
      // Predicated region
      $region9: #{tpu_custom_call.1} parent=5 // pred_check
        _
      $region10: #{tpu_custom_call.1} parent=5 // pred_check_branch
        %123 = sbr.rel (%p120) target = $region12
      $region11: #{tpu_custom_call.1} parent=5 // pred_region
        %s124 = ssub.s32 %s13, 1
      $region12: #{tpu_custom_call.1} parent=5 // pred_fallthru
        _
      %p125 = scmp.lt.s32.totalorder %s13, 6
      // Predicated region
      $region13: #{tpu_custom_call.1} parent=5 // pred_check
        %p126 = pneg %p125
      $region14: #{tpu_custom_call.1} parent=5 // pred_check_branch
        %128 = sbr.rel (%p126) target = $region16
      $region15: #{tpu_custom_call.1} parent=5 // pred_region
        // Predicated region
        $region17: #{tpu_custom_call.1} parent=15 // pred_check
          %p129 = pneg %p62
        $region18: #{tpu_custom_call.1} parent=15 // pred_check_branch
          %131 = sbr.rel (%p129) target = $region20
        $region19: #{tpu_custom_call.1} parent=15 // pred_region
          %s132 = sand.u32 %s52, 1
          %s133 = scalar_lea.sflag [#allocation4], %s132
          %s134 = sand.u32 %s52, 1
          %s135 = smul.addr %s134, 8
          %s136 = scalar_lea.vmem [#allocation3], %s135
          %s137 = smul.u32 %s21, 2
          %p138 = scmp.lt.s32.totalorder %s22, 1
          %s139 = scalar_select %p138, %s22, 1
          %s140 = sadd.s32 %s137, %s139
          %s141 = smul.u32 2, %s140
          %s143 = ssub.s32 128, 128
          %144 = vsyncadd %s133, %s143
          %s145 = smul.addr %s20, 8
          %s146 = sadd.s32 %s141, %s145
          %s147 = smul.addr %s146, 32
          %s148 = scalar_lea.hbm %s0, %s147
          %s149 = sshll.u32 %s136, 4
          %s150 = int_to_ptr.vmem [resolvable:$true] %s149
          %155 = dma.hbm_to_vmem [thread:$0]  %s148, 128, %s150, %s133, 256, 64, 4
        $region20: #{tpu_custom_call.1} parent=15 // pred_fallthru
          _
      $region16: #{tpu_custom_call.1} parent=5 // pred_fallthru
        _
      %p156 = scmp.le.s32.totalorder 1, %s13
      %p157 = scmp.lt.s32.totalorder %s13, 7
      %p158 = pnand %p156, %p157
      %p159 = pneg %p158
      // Predicated region
      $region21: #{tpu_custom_call.1} parent=5 // pred_check
        _
      $region22: #{tpu_custom_call.1} parent=5 // pred_check_branch
        %161 = sbr.rel (%p158) target = $region24
      $region23: #{tpu_custom_call.1} parent=5 // pred_region
        %s162 = ssub.s32 %s13, 1
        %s163 = sand.u32 %s55, 1
        %s164 = scalar_lea.sflag [#allocation4], %s163
        %s165 = sand.u32 %s55, 1
        %s166 = smul.addr %s165, 8
        %s167 = scalar_lea.vmem [#allocation3], %s166
        // Predicated region
        $region25: #{tpu_custom_call.1} parent=23 // pred_check
          %p168 = pneg %p68
        $region26: #{tpu_custom_call.1} parent=23 // pred_check_branch
          %170 = sbr.rel (%p168) target = $region28
        $region27: #{tpu_custom_call.1} parent=23 // pred_region
          %171 = dma.done %s164, 128
        $region28: #{tpu_custom_call.1} parent=23 // pred_fallthru
          _
        %s172 = sand.u32 %s55, 1
        %s173 = scalar_lea.sflag [#allocation4], %s172
        %s174 = sand.u32 %s55, 1
        %s175 = smul.addr %s174, 8
        %s176 = scalar_lea.vmem [#allocation3], %s175
        %p177 = pneg %p68
        %p178 = pneg %p65
        %p179 = pneg %p110
        %p180 = pneg %p107
        %s181 = sand.u32 %s97, 1
        %s182 = scalar_lea.sflag [#allocation5], %s181
        %s183 = sand.u32 %s97, 1
        %s184 = smul.addr %s183, 8
        %s185 = scalar_lea.vmem [#allocation6], %s184
        %s186 = smul.u32 %s24, 2
        %p187 = scmp.lt.s32.totalorder %s25, 1
        %s188 = scalar_select %p187, %s25, 1
        %s189 = sadd.s32 %s186, %s188
        %s190 = smul.u32 2, %s189
        %s191 = smul.u32 %s24, 2
        %s192 = sadd.s32 %s191, %s25
        %s193 = sadd.s32 %s24, 4
        %s194 = ssub.s32 %s25, 2
        %s195 = sadd.s32 %s193, %s194
        %p196 = scmp.lt.s32.totalorder %s25, 2
        %s197 = scalar_select %p196, %s192, %s195
        %s198 = smul.u32 2, %s197
        %p199 = scmp.lt.s32.totalorder %s25, 2
        // Predicated region
        $region29: #{tpu_custom_call.1} parent=23 // pred_check
          %p200 = pneg %p199
        $region30: #{tpu_custom_call.1} parent=23 // pred_check_branch
          %202 = sbr.rel (%p200) target = $region32
        $region31: #{tpu_custom_call.1} parent=23 // pred_region
          %v203 = vld [vmem:[%s167] sm:$0xf]
          %v204 = vld [vmem:[%s167 + $0x4] sm:$0xf]
          %v208 = vunpack.c.l.s4 1983009808
          %v209 = vunpack.c.0.s8 %v208
          %v210 = vlaneseq
          %v211 = vshrl.u32 %v210, 7
          %v212 = vsub.s32 %v209, %v211
          %v213 = vrot.slane %v203, %v212
          %v214 = vcombine.high %v213, %v213
          %v216 = vunpack.c.l.s4 1983009808
          %v217 = vunpack.c.0.s8 %v216
          %v218 = vlaneseq
          %v219 = vshrl.u32 %v218, 7
          %v220 = vsub.s32 %v217, %v219
          %v221 = vrot.slane %v204, %v220
          %v222 = vcombine.high %v221, %v221
          %vm227 = vcmask 1041408
          %v228 = vsel %vm227, %v213, 0.0
          %v229 = vsel %vm227, %v221, 0.0
          %v230 = vadd.f32 %v228, %v229
          %v231 = vsel %vm227, %v214, 0.0
          %v232 = vsel %vm227, %v222, 0.0
          %v233 = vadd.f32 %v231, %v232
          %v234 = vrcp.pop 2.0
          %v235 = vmul.f32 %v230, %v234
          %v236 = vmul.f32 %v233, %v234
          %v239 = vcombine.low %v235, %v236
          %v241 = vunpack.c.l.s4 1983009808
          %v242 = vunpack.c.0.s8 %v241
          %v243 = vlaneseq
          %v244 = vshrl.u32 %v243, 7
          %v245 = vsub.s32 %v242, %v244
          %v246 = vrot.slane %v239, %v245
          %v248 = vsub.f32 %v203, %v246
          %v249 = vsub.f32 %v204, %v246
          %v250 = vmul.f32 %v248, %v248
          %v251 = vmul.f32 %v249, %v249
          %v255 = vunpack.c.l.s4 1983009808
          %v256 = vunpack.c.0.s8 %v255
          %v257 = vlaneseq
          %v258 = vshrl.u32 %v257, 7
          %v259 = vsub.s32 %v256, %v258
          %v260 = vrot.slane %v250, %v259
          %v261 = vcombine.high %v260, %v260
          %v263 = vunpack.c.l.s4 1983009808
          %v264 = vunpack.c.0.s8 %v263
          %v265 = vlaneseq
          %v266 = vshrl.u32 %v265, 7
          %v267 = vsub.s32 %v264, %v266
          %v268 = vrot.slane %v251, %v267
          %v269 = vcombine.high %v268, %v268
          %v274 = vsel %vm227, %v260, 0.0
          %v275 = vsel %vm227, %v268, 0.0
          %v276 = vadd.f32 %v274, %v275
          %v277 = vsel %vm227, %v261, 0.0
          %v278 = vsel %vm227, %v269, 0.0
          %v279 = vadd.f32 %v277, %v278
          %v280 = vmul.f32 %v276, %v234
          %v281 = vmul.f32 %v279, %v234
          %v282 = vadd.f32 %v280, 1e-08
          %v283 = vadd.f32 %v281, 1e-08
          %v284 = vrsqrt.pop %v282
          %v285 = vmul.f32 %v282, %v284
          %vm286 = vcmp.eq.f32.partialorder %v282, inf
          %v287 = vsel %vm286, %v282, %v285
          %vm288 = vcmp.eq.f32.partialorder %v282, 0.0
          %v289 = vand.u32 %v282, 2147483648
          %v290 = vsel %vm288, %v289, %v287
          %v291 = vrsqrt.pop %v283
          %v292 = vmul.f32 %v283, %v291
          %vm293 = vcmp.eq.f32.partialorder %v283, inf
          %v294 = vsel %vm293, %v283, %v292
          %vm295 = vcmp.eq.f32.partialorder %v283, 0.0
          %v296 = vand.u32 %v283, 2147483648
          %v297 = vsel %vm295, %v296, %v294
          %p298 = scmp.eq.s32.totalorder %s25, 0
          // Predicated region
          $region33: #{tpu_custom_call.1} parent=31 // pred_check
            %p299 = pneg %p298
          $region34: #{tpu_custom_call.1} parent=31 // pred_check_branch
            %301 = sbr.rel (%p299) target = $region36
          $region35: #{tpu_custom_call.1} parent=31 // pred_region
            %vm302 = vcmask 1024
            %303 = vst.msk [vmem:[#allocation2] sm:$0x3] %vm302, 0.0
          $region36: #{tpu_custom_call.1} parent=31 // pred_fallthru
            _
          %v304 = vld [vmem:[#allocation2] sm:$0x3]
          %v305 = vsel %vm227, %v290, 0.0
          %v306 = vsel %vm227, %v297, 0.0
          %v307 = vadd.f32 %v305, %v306
          %308 = vadd.xlane.f32.xlu0 %v307
          %v309 = vpop.xlane.xlu0 %308
          %v310 = vadd.f32 %v304, %v309
          %vm311 = vcmask 1024
          %312 = vst.msk [vmem:[#allocation2] sm:$0x3] %vm311, %v310
          %313 = vst [vmem:[%s185] sm:$0xf] %v203
          %314 = vst [vmem:[%s185 + $0x4] sm:$0xf] %v204
        $region32: #{tpu_custom_call.1} parent=23 // pred_fallthru
          _
        %p315 = scmp.ge.s32.totalorder %s25, 2
        // Predicated region
        $region37: #{tpu_custom_call.1} parent=23 // pred_check
          %p316 = pneg %p315
        $region38: #{tpu_custom_call.1} parent=23 // pred_check_branch
          %318 = sbr.rel (%p316) target = $region40
        $region39: #{tpu_custom_call.1} parent=23 // pred_region
          %v319 = vld [vmem:[#allocation2] sm:$0x3]
          %v320 = vmul.f32 %v319, 0.001953125
          %322 = vset.pattern.permute.xlu0 0
          %323 = vperm.xlu0 %322, %v320
          %v324 = vpop.permute.xlu0 %323
          %v326 = vunpack.c.l.s4 269488144
          %v327 = vunpack.c.0.s8 %v326
          %v328 = vlaneseq
          %v329 = vshrl.u32 %v328, 7
          %v330 = vsub.s32 %v327, %v329
          %v331 = vrot.slane %v324, %v330
          %333 = vst [vmem:[%s185] sm:$0xf] %v331
          %334 = vst [vmem:[%s185 + $0x4] sm:$0xf] %v331
        $region40: #{tpu_custom_call.1} parent=23 // pred_fallthru
          _
        %s335 = sand.u32 %s97, 1
        %s336 = scalar_lea.sflag [#allocation5], %s335
        %s337 = sand.u32 %s97, 1
        %s338 = smul.addr %s337, 8
        %s339 = scalar_lea.vmem [#allocation6], %s338
        // Predicated region
        $region41: #{tpu_custom_call.1} parent=23 // pred_check
          %p340 = pneg %p107
        $region42: #{tpu_custom_call.1} parent=23 // pred_check_branch
          %342 = sbr.rel (%p340) target = $region44
        $region43: #{tpu_custom_call.1} parent=23 // pred_region
          %s343 = smul.u32 %s24, 2
          %s344 = sadd.s32 %s343, %s25
          %s345 = sadd.s32 %s24, 4
          %s346 = ssub.s32 %s25, 2
          %s347 = sadd.s32 %s345, %s346
          %p348 = scmp.lt.s32.totalorder %s25, 2
          %s349 = scalar_select %p348, %s344, %s347
          %s350 = smul.u32 2, %s349
          %s352 = ssub.s32 128, 128
          %353 = vsyncadd %s336, %s352
          %s354 = smul.addr %s23, 12
          %s355 = sadd.s32 %s350, %s354
          %s356 = smul.addr %s355, 32
          %s357 = scalar_lea.hbm %s1, %s356
          %s358 = sshll.u32 %s339, 4
          %s359 = int_to_ptr.vmem [resolvable:$true] %s358
          %364 = dma.vmem_to_hbm [thread:$0]  %s359, 128, %s357, %s336, 64, 384, 4
        $region44: #{tpu_custom_call.1} parent=23 // pred_fallthru
          _
      $region24: #{tpu_custom_call.1} parent=5 // pred_fallthru
        _
      %p365 = scmp.le.s32.totalorder 2, %s13
      // Predicated region
      $region45: #{tpu_custom_call.1} parent=5 // pred_check
        %p366 = pneg %p365
      $region46: #{tpu_custom_call.1} parent=5 // pred_check_branch
        %368 = sbr.rel (%p366) target = $region48
      $region47: #{tpu_custom_call.1} parent=5 // pred_region
        %s369 = ssub.s32 %s13, 2
        // Predicated region
        $region49: #{tpu_custom_call.1} parent=47 // pred_check
          %p370 = pneg %p113
        $region50: #{tpu_custom_call.1} parent=47 // pred_check_branch
          %372 = sbr.rel (%p370) target = $region52
        $region51: #{tpu_custom_call.1} parent=47 // pred_region
          %s373 = sand.u32 %s98, 1
          %s374 = scalar_lea.sflag [#allocation5], %s373
          %s375 = sand.u32 %s98, 1
          %s376 = smul.addr %s375, 8
          %s377 = scalar_lea.vmem [#allocation6], %s376
          %378 = dma.done %s374, 128
        $region52: #{tpu_custom_call.1} parent=47 // pred_fallthru
          _
      $region48: #{tpu_custom_call.1} parent=5 // pred_fallthru
        _
    $region6: #{tpu_custom_call.1} parent=1 // loop_footer
      %s17 = sadd.s32 1, %s13
    $region7: #{tpu_custom_call.1} parent=1 // loop_footer_branch
      %12 = sbr.rel target = $region3
    $region8: #{tpu_custom_call.1} parent=1 // loop_exit
      _
    %379 = vsyncpa [#allocation4], 1
    %s380 = scalar_lea.sflag [#allocation4], 1
    %381 = vsyncpa %s380, 1
    %382 = vsyncpa [#allocation5], 1
    %s383 = scalar_lea.sflag [#allocation5], 1
    %384 = vsyncpa %s383, 1

</llo_original>
